<compile_context>
chip_gen: v6e
topology: v6e:2x2x1
jax: 0.10.0
libtpu: 0.0.40
codegen_flags: <defaults>
</compile_context>

<pallas_src>
import functools

import jax
import jax.numpy as jnp
from jax.experimental import pallas as pl
from jax.experimental.pallas import tpu as pltpu

D_EMBED = 128
HIDDEN = 256
P = 59
P_PAD = 128            # lane-dense padding of the 59-way output
TILE_B_DEFAULT = 1024  # batch rows per grid step


def _round_up(x, m):
    return ((x + m - 1) // m) * m


def _xavier_normal(key, shape):
    # PyTorch xavier_normal_: std = sqrt(2 / (fan_in + fan_out)) for 2-D weights.
    fan_out, fan_in = shape
    std = (2.0 / (fan_in + fan_out)) ** 0.5
    return std * jax.random.normal(key, shape, dtype=jnp.float32)


def _pick_tile_b(B, tile_b):
    """Pick a batch tile (multiple of 8); ensure >=2 grid steps for v7x's 2 TCs."""
    tb = min(tile_b, _round_up(B, 8))
    if B > 64 and _round_up(B, tb) // tb < 2:
        tb = _round_up((B + 1) // 2, 8)
    return tb


def ffn_kernel(x1_ref, x2_ref, we_ref, b1_ref, w2_ref, b2_ref, o_ref):
    # x1_ref, x2_ref : [TB, 1]            int32 indices
    # we_ref         : [2*P_PAD, HIDDEN]  bf16, folded E@W1 (rows >= P zeroed)
    # b1_ref         : [1, HIDDEN]        f32
    # w2_ref         : [HIDDEN, P_PAD]    bf16 (cols >= P are zero)
    # b2_ref         : [1, P_PAD]         f32
    # o_ref          : [TB, P_PAD]        f32
    tb = o_ref.shape[0]
    two_p = we_ref.shape[0]        # 2 * P_PAD = 256
    p_pad = two_p // 2

    # Single (TB, 256) one-hot: x1 lives in lanes [0, 128), x2 in [128, 256).
    col = jax.lax.broadcasted_iota(jnp.int32, (tb, two_p), 1)
    hits = (col == x1_ref[...]) | (col == (x2_ref[...] + p_pad))
    oh = hits.astype(jnp.bfloat16)                       # exact 0/1 in bf16

    # linear1 on the (never-materialized) gather+concat, one K=256 MXU pass.
    h = jnp.dot(oh, we_ref[...], preferred_element_type=jnp.float32) + b1_ref[...]
    h = jnp.maximum(h, 0.0)                              # ReLU in f32 (VPU)

    # linear2 with lane-dense (padded) output.
    o = jnp.dot(h.astype(jnp.bfloat16), w2_ref[...],
                preferred_element_type=jnp.float32) + b2_ref[...]
    o_ref[...] = o.astype(o_ref.dtype)


@functools.partial(jax.jit, static_argnames=("tile_b",))
def ffn_forward(x1, x2, params, *, tile_b=TILE_B_DEFAULT):
    """x1, x2: int32 [B] index vectors in [0, P). Returns [B, P] float32."""
    we, b1, w2_pad, b2_pad = params
    B = x1.shape[0]

    tb = _pick_tile_b(B, tile_b)
    Bp = _round_up(B, tb)

    # Pad indices with 0 (a valid row); padded rows are sliced away below.
    x1p = jnp.zeros((Bp, 1), jnp.int32).at[:B, 0].set(x1.astype(jnp.int32))
    x2p = jnp.zeros((Bp, 1), jnp.int32).at[:B, 0].set(x2.astype(jnp.int32))

    grid = (Bp // tb,)
    resident = lambda i: (0, 0)   # weights stay VMEM-resident across grid steps

    out_pad = pl.pallas_call(
        ffn_kernel,
        out_shape=jax.ShapeDtypeStruct((Bp, P_PAD), jnp.float32),
        grid=grid,
        in_specs=[
            pl.BlockSpec((tb, 1), lambda i: (i, 0)),             # x1 indices
            pl.BlockSpec((tb, 1), lambda i: (i, 0)),             # x2 indices
            pl.BlockSpec((2 * P_PAD, HIDDEN), resident),         # folded E@W1
            pl.BlockSpec((1, HIDDEN), resident),                 # b1
            pl.BlockSpec((HIDDEN, P_PAD), resident),             # w2 (padded)
            pl.BlockSpec((1, P_PAD), resident),                  # b2 (padded)
        ],
        out_specs=pl.BlockSpec((tb, P_PAD), lambda i: (i, 0)),
        compiler_params=pltpu.CompilerParams(
            dimension_semantics=("parallel",)),                  # 2 TCs on v7x
    )(x1p, x2p, we, b1, w2_pad, b2_pad)

    # Keep original [B, P] semantics; a padded-[B,128] consumer could skip this.
    return out_pad[:B, :P]


def make_params(key):
    k_emb, k_w1, k_w2 = jax.random.split(key, 3)
    embed_w = _xavier_normal(k_emb, (P, D_EMBED))              # nn.Embedding(P, D)
    # PyTorch Linear stores W as [out, in]; init there, then transpose to [in, out].
    w1_t = _xavier_normal(k_w1, (HIDDEN, 2 * D_EMBED))         # Linear(2D, HIDDEN)
    w2_t = _xavier_normal(k_w2, (P, HIDDEN))                   # Linear(HIDDEN, P)
    w1 = w1_t.T                                                # [2D, HIDDEN]
    w2 = w2_t.T                                                # [HIDDEN, P]
    b1 = jnp.zeros((1, HIDDEN), jnp.float32)                   # init_weights: zeros_
    b2_pad = jnp.zeros((1, P_PAD), jnp.float32)

    # Fold the (zero-padded-to-128-rows) embedding into linear1 in f32, stack
    # the two halves so the kernel needs one K=256 matmul, then cast to bf16.
    embed_pad = jnp.zeros((P_PAD, D_EMBED), jnp.float32).at[:P].set(embed_w)
    we_a = embed_pad @ w1[:D_EMBED]                            # [P_PAD, HIDDEN]
    we_b = embed_pad @ w1[D_EMBED:]                            # [P_PAD, HIDDEN]
    we = jnp.concatenate([we_a, we_b], axis=0).astype(jnp.bfloat16)  # [256, 256]

    w2_pad = (jnp.zeros((HIDDEN, P_PAD), jnp.float32)
              .at[:, :P].set(w2).astype(jnp.bfloat16))

    kernel_params = (we, b1, w2_pad, b2_pad)
    raw = dict(embed=embed_w, w1=w1, b1=b1, w2=w2,
               b2=jnp.zeros((1, P), jnp.float32))
    return kernel_params, raw


if __name__ == "__main__":
    key = jax.random.PRNGKey(0)
    k_params, k_x1, k_x2 = jax.random.split(key, 3)

    params, raw = make_params(k_params)

    B = 8
    x1 = jax.random.randint(k_x1, (B,), 0, P, dtype=jnp.int32)
    x2 = jax.random.randint(k_x2, (B,), 0, P, dtype=jnp.int32)

    out = jax.block_until_ready(ffn_forward(x1, x2, params))

    # Pure-JAX f32 reference with the original PyTorch FFN semantics.
    e = jnp.concatenate([raw["embed"][x1], raw["embed"][x2]], axis=1)
    h = jnp.maximum(e @ raw["w1"] + raw["b1"], 0.0)
    ref = h @ raw["w2"] + raw["b2"]

    assert out.shape == (B, P)
    # bf16 matmul inputs (f32 accumulation) -> loosened tolerance vs f32 ref.
    assert jnp.allclose(out, ref, atol=2e-2, rtol=2e-2), (
        float(jnp.max(jnp.abs(out - ref))))

    # TODO(synk): PyTorch nn.Embedding raises on out-of-range indices; the
    # one-hot encoding here silently yields a zero row instead.
    print("KERNEL_OK")
</pallas_src>

<mosaic_0001>
module attributes {stable_mosaic.version = 11 : i64} {
  func.func @ffn_kernel(%arg0: i32, %arg1: memref<8x1xi32, #tpu.memory_space<vmem>>, %arg2: memref<8x1xi32, #tpu.memory_space<vmem>>, %arg3: memref<256x256xbf16, #tpu.memory_space<vmem>>, %arg4: memref<1x256xf32, #tpu.memory_space<vmem>>, %arg5: memref<256x128xbf16, #tpu.memory_space<vmem>>, %arg6: memref<1x128xf32, #tpu.memory_space<vmem>>, %arg7: memref<8x128xf32, #tpu.memory_space<vmem>>) attributes {dimension_semantics = [#tpu.dimension_semantics<parallel>], iteration_bounds = array<i64: 1>, scalar_prefetch = 0 : i64, scratch_operands = 0 : i64, tpu.core_type = #tpu.core_type<tc>, window_params = [{transform_indices = @transform_0, window_bounds = array<i64: 8, 1>}, {transform_indices = @transform_1, window_bounds = array<i64: 8, 1>}, {pipeline_mode = #tpu.pipeline_mode<synchronous>, transform_indices = @transform_2, window_bounds = array<i64: 256, 256>}, {pipeline_mode = #tpu.pipeline_mode<synchronous>, transform_indices = @transform_3, window_bounds = array<i64: 1, 256>}, {pipeline_mode = #tpu.pipeline_mode<synchronous>, transform_indices = @transform_4, window_bounds = array<i64: 256, 128>}, {pipeline_mode = #tpu.pipeline_mode<synchronous>, transform_indices = @transform_5, window_bounds = array<i64: 1, 128>}, {transform_indices = @transform_6, window_bounds = array<i64: 8, 128>}]} {
    %0 = tpu.iota {dimensions = array<i32: 1>} : vector<8x256xi32>
    %c0 = arith.constant 0 : index
    %c0_0 = arith.constant 0 : index
    %1 = vector.load %arg1[%c0, %c0_0] : memref<8x1xi32, #tpu.memory_space<vmem>>, vector<8x1xi32>
    %2 = vector.broadcast %1 : vector<8x1xi32> to vector<8x256xi32>
    %3 = arith.cmpi eq, %0, %2 : vector<8x256xi32>
    %c0_1 = arith.constant 0 : index
    %c0_2 = arith.constant 0 : index
    %4 = vector.load %arg2[%c0_1, %c0_2] : memref<8x1xi32, #tpu.memory_space<vmem>>, vector<8x1xi32>
    %c128_i32 = arith.constant 128 : i32
    %5 = vector.broadcast %c128_i32 : i32 to vector<8x1xi32>
    %6 = arith.addi %4, %5 : vector<8x1xi32>
    %7 = vector.broadcast %6 : vector<8x1xi32> to vector<8x256xi32>
    %8 = arith.cmpi eq, %0, %7 : vector<8x256xi32>
    %9 = arith.ori %3, %8 : vector<8x256xi1>
    %10 = arith.extui %9 : vector<8x256xi1> to vector<8x256xi32>
    %11 = arith.sitofp %10 : vector<8x256xi32> to vector<8x256xf32>
    %12 = arith.truncf %11 : vector<8x256xf32> to vector<8x256xbf16>
    %c0_3 = arith.constant 0 : index
    %c0_4 = arith.constant 0 : index
    %13 = vector.load %arg3[%c0_3, %c0_4] : memref<256x256xbf16, #tpu.memory_space<vmem>>, vector<256x256xbf16>
    %cst = arith.constant dense<0.000000e+00> : vector<8x256xf32>
    %14 = tpu.matmul %12, %13, %cst {dimension_numbers = #tpu.dot_dimension_numbers<[1], [0], [0], [1], [0, 0, 1, 1], [], []>} : vector<8x256xbf16>, vector<256x256xbf16>, vector<8x256xf32> -> vector<8x256xf32>
    %c0_5 = arith.constant 0 : index
    %c0_6 = arith.constant 0 : index
    %15 = vector.load %arg4[%c0_5, %c0_6] : memref<1x256xf32, #tpu.memory_space<vmem>>, vector<1x256xf32>
    %16 = vector.broadcast %15 : vector<1x256xf32> to vector<8x256xf32>
    %17 = arith.addf %14, %16 : vector<8x256xf32>
    %cst_7 = arith.constant 0.000000e+00 : f32
    %18 = vector.broadcast %cst_7 : f32 to vector<8x256xf32>
    %19 = arith.maximumf %17, %18 : vector<8x256xf32>
    %20 = arith.truncf %19 : vector<8x256xf32> to vector<8x256xbf16>
    %c0_8 = arith.constant 0 : index
    %c0_9 = arith.constant 0 : index
    %21 = vector.load %arg5[%c0_8, %c0_9] : memref<256x128xbf16, #tpu.memory_space<vmem>>, vector<256x128xbf16>
    %cst_10 = arith.constant dense<0.000000e+00> : vector<8x128xf32>
    %22 = tpu.matmul %20, %21, %cst_10 {dimension_numbers = #tpu.dot_dimension_numbers<[1], [0], [0], [1], [0, 0, 1, 1], [], []>} : vector<8x256xbf16>, vector<256x128xbf16>, vector<8x128xf32> -> vector<8x128xf32>
    %c0_11 = arith.constant 0 : index
    %c0_12 = arith.constant 0 : index
    %23 = vector.load %arg6[%c0_11, %c0_12] : memref<1x128xf32, #tpu.memory_space<vmem>>, vector<1x128xf32>
    %24 = vector.broadcast %23 : vector<1x128xf32> to vector<8x128xf32>
    %25 = arith.addf %22, %24 : vector<8x128xf32>
    %c0_13 = arith.constant 0 : index
    %c0_14 = arith.constant 0 : index
    %26 = vector.load %arg7[%c0_13, %c0_14] : memref<8x128xf32, #tpu.memory_space<vmem>>, vector<8x128xf32>
    tpu.vector_store %arg7[%c0_13, %c0_14], %25 {strides = array<i32>} : memref<8x128xf32, #tpu.memory_space<vmem>>, vector<8x128xf32>,
    return
  }
  func.func @transform_0(%arg0: i32) -> (i32, i32) {
    %c0_i32 = arith.constant 0 : i32
    %c0_i32_0 = arith.constant 0 : i32
    return %arg0, %c0_i32 : i32, i32
  }
  func.func @transform_1(%arg0: i32) -> (i32, i32) {
    %c0_i32 = arith.constant 0 : i32
    %c0_i32_0 = arith.constant 0 : i32
    return %arg0, %c0_i32 : i32, i32
  }
  func.func @transform_2(%arg0: i32) -> (i32, i32) {
    %c0_i32 = arith.constant 0 : i32
    %c0_i32_0 = arith.constant 0 : i32
    %c0_i32_1 = arith.constant 0 : i32
    return %c0_i32, %c0_i32_0 : i32, i32
  }
  func.func @transform_3(%arg0: i32) -> (i32, i32) {
    %c0_i32 = arith.constant 0 : i32
    %c0_i32_0 = arith.constant 0 : i32
    %c0_i32_1 = arith.constant 0 : i32
    return %c0_i32, %c0_i32_0 : i32, i32
  }
  func.func @transform_4(%arg0: i32) -> (i32, i32) {
    %c0_i32 = arith.constant 0 : i32
    %c0_i32_0 = arith.constant 0 : i32
    %c0_i32_1 = arith.constant 0 : i32
    return %c0_i32, %c0_i32_0 : i32, i32
  }
  func.func @transform_5(%arg0: i32) -> (i32, i32) {
    %c0_i32 = arith.constant 0 : i32
    %c0_i32_0 = arith.constant 0 : i32
    %c0_i32_1 = arith.constant 0 : i32
    return %c0_i32, %c0_i32_0 : i32, i32
  }
  func.func @transform_6(%arg0: i32) -> (i32, i32) {
    %c0_i32 = arith.constant 0 : i32
    %c0_i32_0 = arith.constant 0 : i32
    return %arg0, %c0_i32 : i32, i32
  }
}

</mosaic_0001>

<llo_original>
// kernel: ffn_forward.1
$region0: #{ffn_forward.1}
  #allocation0 [shape = 'u32[]', space=smem, size = 0x4, offset = 0x4, fixed_abs, tag = 'smem constant byte address 0x4 - core index']
  #allocation1 [shape = 'u32[144,128]{1,0:T(1,128)}', space=vmem, size = 0x12000, scoped, tag = 'internal scratch']
  %s0 = inlined_call_operand.vmem [shape: s32[8,1], index: 0, kind: input, shape index: {}]
  %s1 = inlined_call_operand.vmem [shape: s32[8,1], index: 1, kind: input, shape index: {}]
  %s2 = inlined_call_operand.hbm [shape: bf16[256,256], index: 2, kind: input, shape index: {}]
  %s3 = inlined_call_operand.vmem [shape: f32[1,256], index: 3, kind: input, shape index: {}]
  %s4 = inlined_call_operand.hbm [shape: bf16[256,128], index: 4, kind: input, shape index: {}]
  %s5 = inlined_call_operand.vmem [shape: f32[1,128], index: 5, kind: input, shape index: {}]
  %s6 = inlined_call_operand.hbm [shape: f32[8,128], index: 6, kind: output, shape index: {}]
  %s7 = sld [smem:[#allocation0]]
  $region42: #{ffn_forward.1} parent=0
    _
  %s9 = ssub.s32 1, %s7
  %s10 = scalar_select 0, %s9, %s7
  $region1: #{ffn_forward.1} parent=0
    #allocation2 [shape = 'u8[131072]{0}', space=vmem, size = 0x20000, scoped, tag = 'input window, operand 2, single buffered']
    #allocation3 [shape = 's32[1]{0}', space=sflag, size = 0x4, scoped, tag = 'scoped memory for ffn_forward.1']
    #allocation4 [shape = 's32[1]{0}', space=sflag, size = 0x4, scoped, tag = 'scoped memory for ffn_forward.1']
    #allocation5 [shape = 'u8[65536]{0}', space=vmem, size = 0x10000, scoped, tag = 'input window, operand 4, single buffered']
    #allocation6 [shape = 's32[1]{0}', space=sflag, size = 0x4, scoped, tag = 'scoped memory for ffn_forward.1']
    #allocation7 [shape = 'u8[4096]{0}', space=vmem, size = 0x1000, scoped, tag = 'output window, operand 0, single buffered']
    %11 = vsyncpa [#allocation3], 0
    %12 = vsyncpa [#allocation6], 0
    %13 = vsyncpa [#allocation4], 0
    // Predicated region
    $region2: #{ffn_forward.1} parent=1 // pred_check
      _
    $region3: #{ffn_forward.1} parent=1 // pred_check_branch
      %15 = sbr.rel (0) target = $region5
    $region4: #{ffn_forward.1} parent=1 // pred_region
      _
    $region5: #{ffn_forward.1} parent=1 // pred_fallthru
      _
    // Predicated region
    $region6: #{ffn_forward.1} parent=1 // pred_check
      _
    $region7: #{ffn_forward.1} parent=1 // pred_check_branch
      %17 = sbr.rel (0) target = $region9
    $region8: #{ffn_forward.1} parent=1 // pred_region
      _
    $region9: #{ffn_forward.1} parent=1 // pred_fallthru
      _
    // Predicated region
    $region10: #{ffn_forward.1} parent=1 // pred_check
      _
    $region11: #{ffn_forward.1} parent=1 // pred_check_branch
      %19 = sbr.rel (0) target = $region13
    $region12: #{ffn_forward.1} parent=1 // pred_region
      %s21 = ssub.s32 4096, 4096
      %22 = vsyncadd [#allocation3], %s21
      %s23 = sshll.u32 [#allocation2], 4
      %s24 = int_to_ptr.vmem [resolvable:$true] %s23
      %29 = dma.hbm_to_vmem [thread:$0]  %s2, 4096, %s24, [#allocation3], 128, 128, 8
    $region13: #{ffn_forward.1} parent=1 // pred_fallthru
      _
    // Predicated region
    $region14: #{ffn_forward.1} parent=1 // pred_check
      _
    $region15: #{ffn_forward.1} parent=1 // pred_check_branch
      %31 = sbr.rel (0) target = $region17
    $region16: #{ffn_forward.1} parent=1 // pred_region
      _
    $region17: #{ffn_forward.1} parent=1 // pred_fallthru
      _
    // Predicated region
    $region18: #{ffn_forward.1} parent=1 // pred_check
      _
    $region19: #{ffn_forward.1} parent=1 // pred_check_branch
      %33 = sbr.rel (0) target = $region21
    $region20: #{ffn_forward.1} parent=1 // pred_region
      %s35 = ssub.s32 2048, 2048
      %36 = vsyncadd [#allocation6], %s35
      %s37 = sshll.u32 [#allocation5], 4
      %s38 = int_to_ptr.vmem [resolvable:$true] %s37
      %43 = dma.hbm_to_vmem [thread:$0]  %s4, 2048, %s38, [#allocation6], 64, 64, 4
    $region21: #{ffn_forward.1} parent=1 // pred_fallthru
      _
    // Predicated region
    $region22: #{ffn_forward.1} parent=1 // pred_check
      _
    $region23: #{ffn_forward.1} parent=1 // pred_check_branch
      %45 = sbr.rel (0) target = $region25
    $region24: #{ffn_forward.1} parent=1 // pred_region
      _
    $region25: #{ffn_forward.1} parent=1 // pred_fallthru
      _
    // Predicated region
    $region26: #{ffn_forward.1} parent=1 // pred_check
      _
    $region27: #{ffn_forward.1} parent=1 // pred_check_branch
      %47 = sbr.rel (0) target = $region29
    $region28: #{ffn_forward.1} parent=1 // pred_region
      %48 = dma.done [#allocation3], 4096
    $region29: #{ffn_forward.1} parent=1 // pred_fallthru
      _
    // Predicated region
    $region30: #{ffn_forward.1} parent=1 // pred_check
      _
    $region31: #{ffn_forward.1} parent=1 // pred_check_branch
      %50 = sbr.rel (0) target = $region33
    $region32: #{ffn_forward.1} parent=1 // pred_region
      %51 = dma.done [#allocation6], 2048
    $region33: #{ffn_forward.1} parent=1 // pred_fallthru
      _
    %v53 = vlaneseq
    %v54 = vand.u32 %v53, 127
    %v55 = vadd.s32 %v54, 128
    %v56 = vld [vmem:[%s0] sm:$0xff]
    %57 = vset.pattern.permute.xlu0 0
    %58 = vperm.xlu0 %57, %v56
    %v59 = vpop.permute.xlu0 %58
    %vm60 = vcmp.eq.s32.totalorder %v54, %v59
    %vm61 = vcmp.eq.s32.totalorder %v55, %v59
    %v62 = vld [vmem:[%s1] sm:$0xff]
    %v63 = vadd.s32 %v62, 128
    %64 = vset.pattern.permute.xlu0 0
    %65 = vperm.xlu0 %64, %v63
    %v66 = vpop.permute.xlu0 %65
    %vm67 = vcmp.eq.s32.totalorder %v54, %v66
    %vm68 = vcmp.eq.s32.totalorder %v55, %v66
    %vm69 = vmor %vm60, %vm67
    %vm70 = vmor %vm61, %vm68
    %v71 = vsel %vm69, 1, 0
    %v72 = vsel %vm70, 1, 0
    %v73 = vcvt.s32.f32 %v71
    %v74 = vcvt.s32.f32 %v72
    %v75 = vpack.c.bf16 %v73, %v73
    %v76 = vpack.c.bf16 %v74, %v74
    %v77 = vld [vmem:[#allocation2] sm:$0xff]
    %v78 = vld [vmem:[#allocation2 + $0x8] sm:$0xff]
    %v79 = vld [vmem:[#allocation2 + $0x10] sm:$0xff]
    %v80 = vld [vmem:[#allocation2 + $0x18] sm:$0xff]
    %v81 = vld [vmem:[#allocation2 + $0x20] sm:$0xff]
    %v82 = vld [vmem:[#allocation2 + $0x28] sm:$0xff]
    %v83 = vld [vmem:[#allocation2 + $0x30] sm:$0xff]
    %v84 = vld [vmem:[#allocation2 + $0x38] sm:$0xff]
    %v85 = vld [vmem:[#allocation2 + $0x40] sm:$0xff]
    %v86 = vld [vmem:[#allocation2 + $0x48] sm:$0xff]
    %v87 = vld [vmem:[#allocation2 + $0x50] sm:$0xff]
    %v88 = vld [vmem:[#allocation2 + $0x58] sm:$0xff]
    %v89 = vld [vmem:[#allocation2 + $0x60] sm:$0xff]
    %v90 = vld [vmem:[#allocation2 + $0x68] sm:$0xff]
    %v91 = vld [vmem:[#allocation2 + $0x70] sm:$0xff]
    %v92 = vld [vmem:[#allocation2 + $0x78] sm:$0xff]
    %v93 = vld [vmem:[#allocation2 + $0x80] sm:$0xff]
    %v94 = vld [vmem:[#allocation2 + $0x88] sm:$0xff]
    %v95 = vld [vmem:[#allocation2 + $0x90] sm:$0xff]
    %v96 = vld [vmem:[#allocation2 + $0x98] sm:$0xff]
    %v97 = vld [vmem:[#allocation2 + $0xa0] sm:$0xff]
    %v98 = vld [vmem:[#allocation2 + $0xa8] sm:$0xff]
    %v99 = vld [vmem:[#allocation2 + $0xb0] sm:$0xff]
    %v100 = vld [vmem:[#allocation2 + $0xb8] sm:$0xff]
    %v101 = vld [vmem:[#allocation2 + $0xc0] sm:$0xff]
    %v102 = vld [vmem:[#allocation2 + $0xc8] sm:$0xff]
    %v103 = vld [vmem:[#allocation2 + $0xd0] sm:$0xff]
    %v104 = vld [vmem:[#allocation2 + $0xd8] sm:$0xff]
    %v105 = vld [vmem:[#allocation2 + $0xe0] sm:$0xff]
    %v106 = vld [vmem:[#allocation2 + $0xe8] sm:$0xff]
    %v107 = vld [vmem:[#allocation2 + $0xf0] sm:$0xff]
    %v108 = vld [vmem:[#allocation2 + $0xf8] sm:$0xff]
    %v109 = vld [vmem:[%s3] sm:$0x3]
    %v111 = vlaneseq
    %v112 = vshrl.u32 %v111, 7
    %v113 = vsub.s32 0, %v112
    %v114 = vrot.slane %v109, %v113
    %v115 = vlaneseq
    %v116 = vshrl.u32 %v115, 7
    %v117 = vsub.s32 1, %v116
    %v118 = vrot.slane %v109, %v117
    %v153 = vunpack.c.l.b16 %v77
    %v154 = vunpack.c.h.b16 %v77
    %v155 = vunpack.c.l.b16 %v78
    %v156 = vunpack.c.h.b16 %v78
    %v157 = vunpack.c.l.b16 %v79
    %v158 = vunpack.c.h.b16 %v79
    %v159 = vunpack.c.l.b16 %v80
    %v160 = vunpack.c.h.b16 %v80
    %v161 = vunpack.c.l.b16 %v81
    %v162 = vunpack.c.h.b16 %v81
    %v163 = vunpack.c.l.b16 %v82
    %v164 = vunpack.c.h.b16 %v82
    %v165 = vunpack.c.l.b16 %v83
    %v166 = vunpack.c.h.b16 %v83
    %v167 = vunpack.c.l.b16 %v84
    %v168 = vunpack.c.h.b16 %v84
    %v169 = vunpack.c.l.b16 %v85
    %v170 = vunpack.c.h.b16 %v85
    %v171 = vunpack.c.l.b16 %v86
    %v172 = vunpack.c.h.b16 %v86
    %v173 = vunpack.c.l.b16 %v87
    %v174 = vunpack.c.h.b16 %v87
    %v175 = vunpack.c.l.b16 %v88
    %v176 = vunpack.c.h.b16 %v88
    %v177 = vunpack.c.l.b16 %v89
    %v178 = vunpack.c.h.b16 %v89
    %v179 = vunpack.c.l.b16 %v90
    %v180 = vunpack.c.h.b16 %v90
    %v181 = vunpack.c.l.b16 %v91
    %v182 = vunpack.c.h.b16 %v91
    %v183 = vunpack.c.l.b16 %v92
    %v184 = vunpack.c.h.b16 %v92
    %v185 = vunpack.c.l.b16 %v93
    %v186 = vunpack.c.h.b16 %v93
    %v187 = vunpack.c.l.b16 %v94
    %v188 = vunpack.c.h.b16 %v94
    %v189 = vunpack.c.l.b16 %v95
    %v190 = vunpack.c.h.b16 %v95
    %v191 = vunpack.c.l.b16 %v96
    %v192 = vunpack.c.h.b16 %v96
    %v193 = vunpack.c.l.b16 %v97
    %v194 = vunpack.c.h.b16 %v97
    %v195 = vunpack.c.l.b16 %v98
    %v196 = vunpack.c.h.b16 %v98
    %v197 = vunpack.c.l.b16 %v99
    %v198 = vunpack.c.h.b16 %v99
    %v199 = vunpack.c.l.b16 %v100
    %v200 = vunpack.c.h.b16 %v100
    %v201 = vunpack.c.l.b16 %v101
    %v202 = vunpack.c.h.b16 %v101
    %v203 = vunpack.c.l.b16 %v102
    %v204 = vunpack.c.h.b16 %v102
    %v205 = vunpack.c.l.b16 %v103
    %v206 = vunpack.c.h.b16 %v103
    %v207 = vunpack.c.l.b16 %v104
    %v208 = vunpack.c.h.b16 %v104
    %v209 = vunpack.c.l.b16 %v105
    %v210 = vunpack.c.h.b16 %v105
    %v211 = vunpack.c.l.b16 %v106
    %v212 = vunpack.c.h.b16 %v106
    %v213 = vunpack.c.l.b16 %v107
    %v214 = vunpack.c.h.b16 %v107
    %v215 = vunpack.c.l.b16 %v108
    %v216 = vunpack.c.h.b16 %v108
    %v217 = vpack.c.b16 %v155, %v153
    %v218 = vpack.c.b16 %v156, %v154
    %v219 = vpack.c.b16 %v159, %v157
    %v220 = vpack.c.b16 %v160, %v158
    %v221 = vpack.c.b16 %v163, %v161
    %v222 = vpack.c.b16 %v164, %v162
    %v223 = vpack.c.b16 %v167, %v165
    %v224 = vpack.c.b16 %v168, %v166
    %v225 = vpack.c.b16 %v171, %v169
    %v226 = vpack.c.b16 %v172, %v170
    %v227 = vpack.c.b16 %v175, %v173
    %v228 = vpack.c.b16 %v176, %v174
    %v229 = vpack.c.b16 %v179, %v177
    %v230 = vpack.c.b16 %v180, %v178
    %v231 = vpack.c.b16 %v183, %v181
    %v232 = vpack.c.b16 %v184, %v182
    %v233 = vpack.c.b16 %v187, %v185
    %v234 = vpack.c.b16 %v188, %v186
    %v235 = vpack.c.b16 %v191, %v189
    %v236 = vpack.c.b16 %v192, %v190
    %v237 = vpack.c.b16 %v195, %v193
    %v238 = vpack.c.b16 %v196, %v194
    %v239 = vpack.c.b16 %v199, %v197
    %v240 = vpack.c.b16 %v200, %v198
    %v241 = vpack.c.b16 %v203, %v201
    %v242 = vpack.c.b16 %v204, %v202
    %v243 = vpack.c.b16 %v207, %v205
    %v244 = vpack.c.b16 %v208, %v206
    %v245 = vpack.c.b16 %v211, %v209
    %v246 = vpack.c.b16 %v212, %v210
    %v247 = vpack.c.b16 %v215, %v213
    %v248 = vpack.c.b16 %v216, %v214
    %281 = vmatprep.subr.bf16.mxu0 %v232
    %282 = vmatpush1.bf16.msra.mxu0 %v231
    %283 = vmatprep.subr.bf16.mxu0 %v230
    %284 = vmatpush1.bf16.msra.mxu0 %v229
    %285 = vmatprep.subr.bf16.mxu0 %v228
    %286 = vmatpush1.bf16.msra.mxu0 %v227
    %287 = vmatprep.subr.bf16.mxu0 %v226
    %288 = vmatpush1.bf16.msra.mxu0 %v225
    %289 = vmatprep.subr.bf16.mxu0 %v224
    %290 = vmatpush1.bf16.msra.mxu0 %v223
    %291 = vmatprep.subr.bf16.mxu0 %v222
    %292 = vmatpush1.bf16.msra.mxu0 %v221
    %293 = vmatprep.subr.bf16.mxu0 %v220
    %294 = vmatpush1.bf16.msra.mxu0 %v219
    %295 = vmatprep.subr.bf16.mxu0 %v218
    %296 = vmatpush1.bf16.msra.mxu0 %v217
    %297 = vmatprep.subr.bf16.mxu0 %v248
    %298 = vmatpush2.bf16.msra.mxu0 %v247
    %299 = vmatprep.subr.bf16.mxu0 %v246
    %300 = vmatpush2.bf16.msra.mxu0 %v245
    %301 = vmatprep.subr.bf16.mxu0 %v244
    %302 = vmatpush2.bf16.msra.mxu0 %v243
    %303 = vmatprep.subr.bf16.mxu0 %v242
    %304 = vmatpush2.bf16.msra.mxu0 %v241
    %305 = vmatprep.subr.bf16.mxu0 %v240
    %306 = vmatpush2.bf16.msra.mxu0 %v239
    %307 = vmatprep.subr.bf16.mxu0 %v238
    %308 = vmatpush2.bf16.msra.mxu0 %v237
    %309 = vmatprep.subr.bf16.mxu0 %v236
    %310 = vmatpush2.bf16.msra.mxu0 %v235
    %311 = vmatprep.subr.bf16.mxu0 %v234
    %312 = vmatpush2.bf16.msra.mxu0 %v233
    %313 = vmatprep.mubr.bf16.mxu0 %v76
    %314 = vmatmul.mubr.bf16.gmra.mxu0 %v75
    %v315 = vpop.f32.mrf.mxu0
    %v316 = vadd.f32 %v114, %v315
    %v317 = vpop.f32.mrf.mxu0
    %v318 = vadd.f32 %v118, %v317
    %v319 = vpop.f32.mrf.mxu0
    %v320 = vpop.f32.mrf.mxu0
    %321 = vdwg.mxu0
    %v322 = vmax.f32 %v316, 0.0
    %v323 = vmax.f32 %v318, 0.0
    %v324 = vpack.c.bf16 %v322, %v322
    %v325 = vpack.c.bf16 %v323, %v323
    %v326 = vld [vmem:[#allocation5] sm:$0xf]
    %v327 = vld [vmem:[#allocation5 + $0x4] sm:$0xf]
    %v328 = vld [vmem:[#allocation5 + $0x8] sm:$0xf]
    %v329 = vld [vmem:[#allocation5 + $0xc] sm:$0xf]
    %v330 = vld [vmem:[#allocation5 + $0x10] sm:$0xf]
    %v331 = vld [vmem:[#allocation5 + $0x14] sm:$0xf]
    %v332 = vld [vmem:[#allocation5 + $0x18] sm:$0xf]
    %v333 = vld [vmem:[#allocation5 + $0x1c] sm:$0xf]
    %v334 = vld [vmem:[#allocation5 + $0x20] sm:$0xf]
    %v335 = vld [vmem:[#allocation5 + $0x24] sm:$0xf]
    %v336 = vld [vmem:[#allocation5 + $0x28] sm:$0xf]
    %v337 = vld [vmem:[#allocation5 + $0x2c] sm:$0xf]
    %v338 = vld [vmem:[#allocation5 + $0x30] sm:$0xf]
    %v339 = vld [vmem:[#allocation5 + $0x34] sm:$0xf]
    %v340 = vld [vmem:[#allocation5 + $0x38] sm:$0xf]
    %v341 = vld [vmem:[#allocation5 + $0x3c] sm:$0xf]
    %v342 = vld [vmem:[#allocation5 + $0x40] sm:$0xf]
    %v343 = vld [vmem:[#allocation5 + $0x44] sm:$0xf]
    %v344 = vld [vmem:[#allocation5 + $0x48] sm:$0xf]
    %v345 = vld [vmem:[#allocation5 + $0x4c] sm:$0xf]
    %v346 = vld [vmem:[#allocation5 + $0x50] sm:$0xf]
    %v347 = vld [vmem:[#allocation5 + $0x54] sm:$0xf]
    %v348 = vld [vmem:[#allocation5 + $0x58] sm:$0xf]
    %v349 = vld [vmem:[#allocation5 + $0x5c] sm:$0xf]
    %v350 = vld [vmem:[#allocation5 + $0x60] sm:$0xf]
    %v351 = vld [vmem:[#allocation5 + $0x64] sm:$0xf]
    %v352 = vld [vmem:[#allocation5 + $0x68] sm:$0xf]
    %v353 = vld [vmem:[#allocation5 + $0x6c] sm:$0xf]
    %v354 = vld [vmem:[#allocation5 + $0x70] sm:$0xf]
    %v355 = vld [vmem:[#allocation5 + $0x74] sm:$0xf]
    %v356 = vld [vmem:[#allocation5 + $0x78] sm:$0xf]
    %v357 = vld [vmem:[#allocation5 + $0x7c] sm:$0xf]
    %v358 = vld [vmem:[%s5] sm:$0x1]
    %v360 = vlaneseq
    %v361 = vshrl.u32 %v360, 7
    %v362 = vsub.s32 0, %v361
    %v363 = vrot.slane %v358, %v362
    %v397 = vunpack.c.l.b16 %v326
    %v398 = vunpack.c.l.b16 %v327
    %v399 = vunpack.c.l.b16 %v328
    %v400 = vunpack.c.l.b16 %v329
    %v401 = vunpack.c.l.b16 %v330
    %v402 = vunpack.c.l.b16 %v331
    %v403 = vunpack.c.l.b16 %v332
    %v404 = vunpack.c.l.b16 %v333
    %v405 = vunpack.c.l.b16 %v334
    %v406 = vunpack.c.l.b16 %v335
    %v407 = vunpack.c.l.b16 %v336
    %v408 = vunpack.c.l.b16 %v337
    %v409 = vunpack.c.l.b16 %v338
    %v410 = vunpack.c.l.b16 %v339
    %v411 = vunpack.c.l.b16 %v340
    %v412 = vunpack.c.l.b16 %v341
    %v413 = vunpack.c.l.b16 %v342
    %v414 = vunpack.c.l.b16 %v343
    %v415 = vunpack.c.l.b16 %v344
    %v416 = vunpack.c.l.b16 %v345
    %v417 = vunpack.c.l.b16 %v346
    %v418 = vunpack.c.l.b16 %v347
    %v419 = vunpack.c.l.b16 %v348
    %v420 = vunpack.c.l.b16 %v349
    %v421 = vunpack.c.l.b16 %v350
    %v422 = vunpack.c.l.b16 %v351
    %v423 = vunpack.c.l.b16 %v352
    %v424 = vunpack.c.l.b16 %v353
    %v425 = vunpack.c.l.b16 %v354
    %v426 = vunpack.c.l.b16 %v355
    %v427 = vunpack.c.l.b16 %v356
    %v428 = vunpack.c.l.b16 %v357
    %v429 = vpack.c.b16 %v398, %v397
    %v430 = vpack.c.b16 %v400, %v399
    %v431 = vpack.c.b16 %v402, %v401
    %v432 = vpack.c.b16 %v404, %v403
    %v433 = vpack.c.b16 %v406, %v405
    %v434 = vpack.c.b16 %v408, %v407
    %v435 = vpack.c.b16 %v410, %v409
    %v436 = vpack.c.b16 %v412, %v411
    %v437 = vpack.c.b16 %v414, %v413
    %v438 = vpack.c.b16 %v416, %v415
    %v439 = vpack.c.b16 %v418, %v417
    %v440 = vpack.c.b16 %v420, %v419
    %v441 = vpack.c.b16 %v422, %v421
    %v442 = vpack.c.b16 %v424, %v423
    %v443 = vpack.c.b16 %v426, %v425
    %v444 = vpack.c.b16 %v428, %v427
    %461 = vmatprep.subr.bf16.mxu0 0
    %462 = vmatpush1.bf16.msra.mxu0 %v436
    %463 = vmatprep.subr.bf16.mxu0 0
    %464 = vmatpush1.bf16.msra.mxu0 %v435
    %465 = vmatprep.subr.bf16.mxu0 0
    %466 = vmatpush1.bf16.msra.mxu0 %v434
    %467 = vmatprep.subr.bf16.mxu0 0
    %468 = vmatpush1.bf16.msra.mxu0 %v433
    %469 = vmatprep.subr.bf16.mxu0 0
    %470 = vmatpush1.bf16.msra.mxu0 %v432
    %471 = vmatprep.subr.bf16.mxu0 0
    %472 = vmatpush1.bf16.msra.mxu0 %v431
    %473 = vmatprep.subr.bf16.mxu0 0
    %474 = vmatpush1.bf16.msra.mxu0 %v430
    %475 = vmatprep.subr.bf16.mxu0 0
    %476 = vmatpush1.bf16.msra.mxu0 %v429
    %477 = vmatprep.subr.bf16.mxu0 0
    %478 = vmatpush2.bf16.msra.mxu0 %v444
    %479 = vmatprep.subr.bf16.mxu0 0
    %480 = vmatpush2.bf16.msra.mxu0 %v443
    %481 = vmatprep.subr.bf16.mxu0 0
    %482 = vmatpush2.bf16.msra.mxu0 %v442
    %483 = vmatprep.subr.bf16.mxu0 0
    %484 = vmatpush2.bf16.msra.mxu0 %v441
    %485 = vmatprep.subr.bf16.mxu0 0
    %486 = vmatpush2.bf16.msra.mxu0 %v440
    %487 = vmatprep.subr.bf16.mxu0 0
    %488 = vmatpush2.bf16.msra.mxu0 %v439
    %489 = vmatprep.subr.bf16.mxu0 0
    %490 = vmatpush2.bf16.msra.mxu0 %v438
    %491 = vmatprep.subr.bf16.mxu0 0
    %492 = vmatpush2.bf16.msra.mxu0 %v437
    %493 = vmatprep.mubr.bf16.mxu0 %v325
    %494 = vmatmul.mubr.bf16.gmra.mxu0 %v324
    %v495 = vpop.f32.mrf.mxu0
    %v496 = vadd.f32 %v363, %v495
    %v497 = vpop.f32.mrf.mxu0
    %v498 = vpop.f32.mrf.mxu0
    %v499 = vpop.f32.mrf.mxu0
    %500 = vdwg.mxu0
    %501 = vst [vmem:[#allocation7] sm:$0xff] %v496
    // Predicated region
    $region34: #{ffn_forward.1} parent=1 // pred_check
      _
    $region35: #{ffn_forward.1} parent=1 // pred_check_branch
      %503 = sbr.rel (0) target = $region37
    $region36: #{ffn_forward.1} parent=1 // pred_region
      %s505 = ssub.s32 128, 128
      %506 = vsyncadd [#allocation4], %s505
      %s508 = sshll.u32 [#allocation7], 4
      %s509 = int_to_ptr.vmem [resolvable:$true] %s508
      %511 = dma.vmem_to_hbm [thread:$0]  %s509, 128, %s6, [#allocation4]
    $region37: #{ffn_forward.1} parent=1 // pred_fallthru
      _
    // Predicated region
    $region38: #{ffn_forward.1} parent=1 // pred_check
      _
    $region39: #{ffn_forward.1} parent=1 // pred_check_branch
      %513 = sbr.rel (0) target = $region41
    $region40: #{ffn_forward.1} parent=1 // pred_region
      %514 = dma.done [#allocation4], 128
    $region41: #{ffn_forward.1} parent=1 // pred_fallthru
      _
    %515 = vsyncpa [#allocation3], 1
    %516 = vsyncpa [#allocation6], 1
    %517 = vsyncpa [#allocation4], 1

</llo_original>
